<compile_context>
chip_gen: v7x
topology: tpu7x:2x2x1
jax: 0.10.0
libtpu: 0.0.40
codegen_flags: <defaults>
</compile_context>

<pallas_src>
import functools
import math

import jax
import jax.numpy as jnp
from jax.experimental import pallas as pl
from jax.experimental.pallas import tpu as pltpu


# --------------------------------------------------------------------------
# tiling helpers
# --------------------------------------------------------------------------
def _pick_tile(total, target, multiple=128):
    """Largest t <= target that divides `total` and is a multiple of `multiple`.
    Falls back to the full extent (a full-extent block is always legal)."""
    t = (min(target, total) // multiple) * multiple
    while t >= multiple:
        if total % t == 0:
            return t
        t -= multiple
    return total


def _pick_tk(S, tq, di, cout, budget_bytes=20 * 1024 * 1024):
    """Prefer tk = S (grid-constant K/V, ki axis collapses to 1) as long as the
    attention working set stays under a conservative VMEM budget (fits the
    32 MiB scoped default on v6e/v7x)."""
    d3 = 3 * di

    def est(tk):
        return (2 * tq * d3 * 2          # q tile, double-buffered, bf16
                + 2 * tk * d3 * 2        # kv tile, double-buffered, bf16
                + 2 * cout * tq * 4      # p output tile, double-buffered, f32
                + tq * di * 4 + 2 * tq * 4   # acc / m / l scratch
                + 3 * tq * tk * 4)       # score + prob temporaries (headroom)

    cands = [S] + [t for t in range((S // 128) * 128, 127, -128)
                   if S % t == 0 and t < S]
    for t in cands:
        if est(t) <= budget_bytes:
            return t
    return cands[-1]


# --------------------------------------------------------------------------
# Kernel 1: fused theta/phi/g 1x1x1 projection (single MXU matmul per tile)
#   x is read in its native [N, C, S] layout; the transpose happens in-kernel.
# --------------------------------------------------------------------------
def _qkv_proj_kernel(x_ref, w_ref, b_ref, qkv_ref):
    x = jnp.transpose(x_ref[0]).astype(jnp.bfloat16)          # [ts, C]
    acc = jnp.dot(x, w_ref[...], preferred_element_type=jnp.float32)  # [ts, 3*Di]
    qkv_ref[0] = (acc + b_ref[...]).astype(qkv_ref.dtype)


def _qkv_projection(x_ncs, w_qkv, b_qkv, *, ts):
    N, C, S = x_ncs.shape
    d3 = w_qkv.shape[1]
    full = lambda n, i: (0, 0)
    return pl.pallas_call(
        _qkv_proj_kernel,
        out_shape=jax.ShapeDtypeStruct((N, S, d3), jnp.bfloat16),
        grid_spec=pltpu.PrefetchScalarGridSpec(
            num_scalar_prefetch=0,
            grid=(N, S // ts),
            in_specs=[
                pl.BlockSpec((1, C, ts), lambda n, i: (n, 0, i)),
                pl.BlockSpec((C, d3), full),
                pl.BlockSpec((1, d3), full),
            ],
            out_specs=pl.BlockSpec((1, ts, d3), lambda n, i: (n, i, 0)),
        ),
        compiler_params=pltpu.CompilerParams(
            dimension_semantics=("parallel", "parallel")),
    )(x_ncs, w_qkv, b_qkv)


# --------------------------------------------------------------------------
# Kernel 2: flash-attention (online softmax) + fused conv_out projection
#           + fused BatchNorm partial statistics (per-n sum / sum-of-squares)
#   Output p is stored already transposed to [N, C, S] (lane-dense stores).
# --------------------------------------------------------------------------
def _attn_proj_kernel(q_ref, kv_ref, wo_ref, bo_ref,
                      p_ref, sum_ref, sq_ref,
                      m_sc, l_sc, acc_sc, *, di):
    qi = pl.program_id(1)
    ki = pl.program_id(2)

    @pl.when((qi == 0) & (ki == 0))
    def _():
        sum_ref[...] = jnp.zeros_like(sum_ref)
        sq_ref[...] = jnp.zeros_like(sq_ref)

    @pl.when(ki == 0)
    def _():
        m_sc[...] = jnp.full_like(m_sc, -jnp.inf)
        l_sc[...] = jnp.zeros_like(l_sc)
        acc_sc[...] = jnp.zeros_like(acc_sc)

    # theta / phi / g are static lane slices of the fused qkv tile (bf16).
    q = q_ref[0, :, 0:di]                 # [tq, Di]  (softmax scale pre-folded)
    k = kv_ref[0, :, di:2 * di]           # [tk, Di]
    v = kv_ref[0, :, 2 * di:3 * di]       # [tk, Di]

    # scores (never materialized in HBM)
    s = jax.lax.dot_general(q, k, (((1,), (1,)), ((), ())),
                            preferred_element_type=jnp.float32)   # [tq, tk] f32

    m_prev = m_sc[...]
    m_new = jnp.maximum(m_prev, jnp.max(s, axis=-1, keepdims=True))
    alpha = jnp.exp(m_prev - m_new)
    prob = jnp.exp(s - m_new)
    l_sc[...] = alpha * l_sc[...] + jnp.sum(prob, axis=-1, keepdims=True)
    acc_sc[...] = alpha * acc_sc[...] + jnp.dot(
        prob.astype(jnp.bfloat16), v, preferred_element_type=jnp.float32)
    m_sc[...] = m_new

    @pl.when(ki == pl.num_programs(2) - 1)
    def _():
        attn = acc_sc[...] * pl.reciprocal(l_sc[...], approx=True)  # [tq, Di] f32
        p = (jnp.dot(attn.astype(jnp.bfloat16), wo_ref[...],
                     preferred_element_type=jnp.float32)
             + bo_ref[...])                                          # [tq, C] f32
        # BatchNorm partial statistics (accumulated across qi; per-n output)
        sum_ref[0] += jnp.sum(p, axis=0, keepdims=True)
        sq_ref[0] += jnp.sum(p * p, axis=0, keepdims=True)
        # store already transposed -> [C, tq] block of the NCS output
        p_ref[0] = jnp.transpose(p)


def _attention_proj(qkv, wo, bo, *, di, cout, tq, tk):
    N, S, d3 = qkv.shape
    nq, nk = S // tq, S // tk
    full3 = lambda n, qi, ki: (0, 0)
    cost = pl.CostEstimate(
        flops=int(4 * N * S * S * di + 2 * N * S * di * cout),
        transcendentals=int(N * S * S + N * S * nk + N * S),
        bytes_accessed=int(N * S * d3 * 2            # q tiles (once per (n,qi))
                           + N * nq * S * d3 * 2     # k/v re-read per qi
                           + di * cout * 2 + cout * 4
                           + N * cout * S * 4        # p writes
                           + 2 * N * cout * 4),      # partial stats
    )
    return pl.pallas_call(
        functools.partial(_attn_proj_kernel, di=di),
        out_shape=(jax.ShapeDtypeStruct((N, cout, S), jnp.float32),
                   jax.ShapeDtypeStruct((N, 1, cout), jnp.float32),
                   jax.ShapeDtypeStruct((N, 1, cout), jnp.float32)),
        grid_spec=pltpu.PrefetchScalarGridSpec(
            num_scalar_prefetch=0,
            grid=(N, nq, nk),
            in_specs=[
                pl.BlockSpec((1, tq, d3), lambda n, qi, ki: (n, qi, 0)),
                pl.BlockSpec((1, tk, d3), lambda n, qi, ki: (n, ki, 0)),
                pl.BlockSpec((di, cout), full3),
                pl.BlockSpec((1, cout), full3),
            ],
            out_specs=(
                pl.BlockSpec((1, cout, tq), lambda n, qi, ki: (n, 0, qi)),
                pl.BlockSpec((1, 1, cout), lambda n, qi, ki: (n, 0, 0)),
                pl.BlockSpec((1, 1, cout), lambda n, qi, ki: (n, 0, 0)),
            ),
            scratch_shapes=[
                pltpu.VMEM((tq, 1), jnp.float32),   # running max
                pltpu.VMEM((tq, 1), jnp.float32),   # running denom
                pltpu.VMEM((tq, di), jnp.float32),  # running numerator
            ],
        ),
        # qi must be "arbitrary": the BN partial stats accumulate across it.
        # n stays "parallel" so v7x megacore sharding is preserved.
        compiler_params=pltpu.CompilerParams(
            dimension_semantics=("parallel", "arbitrary", "arbitrary")),
        cost_estimate=cost,
    )(qkv, qkv, wo, bo)


# --------------------------------------------------------------------------
# Kernel 3: BN apply (precomputed per-channel scale/shift) + residual add
#   Everything in [N, C, S] layout -> lane-dense reads and stores, no transpose.
# --------------------------------------------------------------------------
def _bn_residual_kernel(x_ref, p_ref, scale_ref, shift_ref, o_ref):
    o_ref[0] = x_ref[0] + p_ref[0] * scale_ref[...] + shift_ref[...]


def _bn_residual(x_ncs, p_ncs, scale, shift, *, ts):
    N, C, S = x_ncs.shape
    blk = pl.BlockSpec((1, C, ts), lambda n, i: (n, 0, i))
    full = lambda n, i: (0, 0)
    return pl.pallas_call(
        _bn_residual_kernel,
        out_shape=jax.ShapeDtypeStruct((N, C, S), jnp.float32),
        grid_spec=pltpu.PrefetchScalarGridSpec(
            num_scalar_prefetch=0,
            grid=(N, S // ts),
            in_specs=[blk, blk,
                      pl.BlockSpec((C, 1), full),
                      pl.BlockSpec((C, 1), full)],
            out_specs=blk,
        ),
        compiler_params=pltpu.CompilerParams(
            dimension_semantics=("parallel", "parallel")),
    )(x_ncs, p_ncs, scale, shift)


# --------------------------------------------------------------------------
# Module equivalent
# --------------------------------------------------------------------------
class NonlocalPallas:
    """Pallas equivalent of Nonlocal (softmax instantiation, no pooling)."""

    def __init__(self, key, dim, dim_inner, pool_size=None,
                 instantiation="softmax", norm_eps=1e-5):
        assert instantiation == "softmax"  # TODO(synk): 'dot_product' instantiation not implemented
        use_pool = False if pool_size is None else any(s > 1 for s in pool_size)
        assert not use_pool  # TODO(synk): MaxPool3d on the phi/g path (pool_size) not implemented
        self.dim, self.dim_inner, self.eps = dim, dim_inner, norm_eps

        ks = jax.random.split(key, 8)

        def conv_init(k, cin, cout):
            return (jax.random.normal(k, (cin, cout), jnp.float32)
                    * (1.0 / math.sqrt(cin)))

        # 1x1x1 conv weights stored channels-last: y = x @ W + b (f32 masters)
        self.w_theta = conv_init(ks[0], dim, dim_inner)
        self.w_phi = conv_init(ks[1], dim, dim_inner)
        self.w_g = conv_init(ks[2], dim, dim_inner)
        self.w_out = conv_init(ks[3], dim_inner, dim)
        self.b_theta = 0.1 * jax.random.normal(ks[4], (1, dim_inner), jnp.float32)
        self.b_phi = 0.1 * jax.random.normal(ks[5], (1, dim_inner), jnp.float32)
        self.b_g = 0.1 * jax.random.normal(ks[6], (1, dim_inner), jnp.float32)
        self.b_out = jnp.zeros((1, dim), jnp.float32)
        kg, kb = jax.random.split(ks[7])
        self.gamma = 1.0 + 0.1 * jax.random.normal(kg, (1, dim), jnp.float32)
        self.beta = 0.1 * jax.random.normal(kb, (1, dim), jnp.float32)

    def __call__(self, x):
        N, C, T, H, W = x.shape
        S = T * H * W
        M = N * S

        # NCDHW -> [N, C, S] is a free reshape; no XLA transposes anywhere.
        x_ncs = x.reshape(N, C, S)

        ts_q = _pick_tile(S, 512)                       # QKV projection tile
        tq = _pick_tile(S, 256)                         # attention query tile
        tk = _pick_tk(S, tq, self.dim_inner, C)         # key tile (S if it fits VMEM)
        ts_r = _pick_tile(S, 1024)                      # BN/residual tile

        # Fuse theta/phi/g into one weight; fold dim_inner^-0.5 into theta;
        # bf16 operands for the MXU (biases stay f32).
        scale = float(self.dim_inner) ** -0.5
        w_qkv = jnp.concatenate(
            [self.w_theta * scale, self.w_phi, self.w_g], axis=1).astype(jnp.bfloat16)
        b_qkv = jnp.concatenate(
            [self.b_theta * scale, self.b_phi, self.b_g], axis=1)
        wo = self.w_out.astype(jnp.bfloat16)

        qkv = _qkv_projection(x_ncs, w_qkv, b_qkv, ts=ts_q)

        p_ncs, psum, psq = _attention_proj(
            qkv, wo, self.b_out, di=self.dim_inner, cout=C, tq=tq, tk=tk)

        # BatchNorm3d training-mode forward: batch stats (biased variance) over
        # (N, T, H, W). Per-n partials come from the attention epilogue; the
        # tiny reduction over N happens in XLA glue.
        total = jnp.sum(psum, axis=0).reshape(1, C)
        totsq = jnp.sum(psq, axis=0).reshape(1, C)
        mean = total / M
        var = jnp.maximum(totsq / M - mean * mean, 0.0)  # E[x^2]-E[x]^2 in f32
        inv = jax.lax.rsqrt(var + self.eps)
        bn_scale = (self.gamma * inv).reshape(C, 1)
        bn_shift = (self.beta - mean * self.gamma * inv).reshape(C, 1)
        # TODO(synk): running_mean/running_var (momentum) buffers are not tracked.

        out_ncs = _bn_residual(x_ncs, p_ncs, bn_scale, bn_shift, ts=ts_r)
        return out_ncs.reshape(N, C, T, H, W)


# --------------------------------------------------------------------------
# Pure-JAX reference (f32) for the correctness check in the smoke test
# --------------------------------------------------------------------------
def nonlocal_reference(x, m: NonlocalPallas):
    N, C, T, H, W = x.shape
    S = T * H * W
    hp = jax.lax.Precision.HIGHEST
    xf = x.reshape(N, C, S)

    def conv1(w, b):
        return jnp.einsum("ncs,cd->nds", xf, w, precision=hp) + b.reshape(1, -1, 1)

    theta = conv1(m.w_theta, m.b_theta)
    phi = conv1(m.w_phi, m.b_phi)
    g = conv1(m.w_g, m.b_g)
    tp = jnp.einsum("nct,ncp->ntp", theta, phi, precision=hp) * m.dim_inner ** -0.5
    tp = jax.nn.softmax(tp, axis=2)
    tpg = jnp.einsum("ntg,ncg->nct", tp, g, precision=hp)
    p = jnp.einsum("nds,dc->ncs", tpg, m.w_out, precision=hp) + m.b_out.reshape(1, -1, 1)
    mean = jnp.mean(p, axis=(0, 2), keepdims=True)
    var = jnp.mean((p - mean) ** 2, axis=(0, 2), keepdims=True)
    pbn = ((p - mean) * jax.lax.rsqrt(var + m.eps) * m.gamma.reshape(1, -1, 1)
           + m.beta.reshape(1, -1, 1))
    return x + pbn.reshape(N, C, T, H, W)


if __name__ == "__main__":
    key = jax.random.PRNGKey(0)
    k_x, k_p = jax.random.split(key)

    # Small shapes: N=2, dim=32, dim_inner=16, T=4, H=W=8  (S = 256)
    N, C, T, H, W = 2, 32, 4, 8, 8
    dim_inner = 16

    x = jax.random.normal(k_x, (N, C, T, H, W), jnp.float32)
    model = NonlocalPallas(k_p, dim=C, dim_inner=dim_inner)

    out = jax.block_until_ready(model(x))

    assert out.shape == (N, C, T, H, W), out.shape
    assert bool(jnp.all(jnp.isfinite(out)))

    ref = jax.block_until_ready(nonlocal_reference(x, model))
    max_err = float(jnp.max(jnp.abs(out - ref)))
    # relative error on the non-local branch (out - x) — kernel runs in bf16 on
    # the MXU, reference is f32, and BatchNorm amplifies absolute differences.
    rel_err = float(jnp.linalg.norm(out - ref) / jnp.linalg.norm(ref - x))
    assert max_err < 1.5e-1, f"max abs err vs reference: {max_err}"
    assert rel_err < 8e-2, f"relative err on non-local branch: {rel_err}"

    print("KERNEL_OK")
</pallas_src>

<mosaic_0001>
module attributes {stable_mosaic.version = 11 : i64} {
  func.func @_qkv_proj_kernel(%arg0: i32, %arg1: i32, %arg2: memref<1x32x256xf32, #tpu.memory_space<vmem>>, %arg3: memref<32x48xbf16, #tpu.memory_space<vmem>>, %arg4: memref<1x48xf32, #tpu.memory_space<vmem>>, %arg5: memref<1x256x48xbf16, #tpu.memory_space<vmem>>) attributes {dimension_semantics = [#tpu.dimension_semantics<parallel>, #tpu.dimension_semantics<parallel>], iteration_bounds = array<i64: 2, 1>, scalar_prefetch = 0 : i64, scratch_operands = 0 : i64, tpu.core_type = #tpu.core_type<tc>, window_params = [{transform_indices = @transform_0, window_bounds = array<i64: 1, 32, 256>}, {pipeline_mode = #tpu.pipeline_mode<synchronous>, transform_indices = @transform_1, window_bounds = array<i64: 32, 48>}, {pipeline_mode = #tpu.pipeline_mode<synchronous>, transform_indices = @transform_2, window_bounds = array<i64: 1, 48>}, {transform_indices = @transform_3, window_bounds = array<i64: 1, 256, 48>}]} {
    %c0 = arith.constant 0 : index
    %c0_0 = arith.constant 0 : index
    %c0_1 = arith.constant 0 : index
    %0 = vector.load %arg2[%c0, %c0_0, %c0_1] : memref<1x32x256xf32, #tpu.memory_space<vmem>>, vector<1x32x256xf32>
    %1 = vector.shape_cast %0 : vector<1x32x256xf32> to vector<32x256xf32>
    %2 = tpu.transpose %1, [1, 0] : vector<32x256xf32> -> vector<256x32xf32>
    %3 = arith.truncf %2 : vector<256x32xf32> to vector<256x32xbf16>
    %c0_2 = arith.constant 0 : index
    %c0_3 = arith.constant 0 : index
    %4 = vector.load %arg3[%c0_2, %c0_3] : memref<32x48xbf16, #tpu.memory_space<vmem>>, vector<32x48xbf16>
    %cst = arith.constant dense<0.000000e+00> : vector<256x48xf32>
    %5 = tpu.matmul %3, %4, %cst {dimension_numbers = #tpu.dot_dimension_numbers<[1], [0], [0], [1], [0, 0, 1, 1], [], []>} : vector<256x32xbf16>, vector<32x48xbf16>, vector<256x48xf32> -> vector<256x48xf32>
    %c0_4 = arith.constant 0 : index
    %c0_5 = arith.constant 0 : index
    %6 = vector.load %arg4[%c0_4, %c0_5] : memref<1x48xf32, #tpu.memory_space<vmem>>, vector<1x48xf32>
    %7 = vector.broadcast %6 : vector<1x48xf32> to vector<256x48xf32>
    %8 = arith.addf %5, %7 : vector<256x48xf32>
    %9 = arith.truncf %8 : vector<256x48xf32> to vector<256x48xbf16>
    %c0_6 = arith.constant 0 : index
    %c0_7 = arith.constant 0 : index
    %c0_8 = arith.constant 0 : index
    %10 = vector.load %arg5[%c0_6, %c0_7, %c0_8] : memref<1x256x48xbf16, #tpu.memory_space<vmem>>, vector<1x256x48xbf16>
    %11 = vector.shape_cast %10 : vector<1x256x48xbf16> to vector<256x48xbf16>
    %12 = vector.shape_cast %9 : vector<256x48xbf16> to vector<1x256x48xbf16>
    tpu.vector_store %arg5[%c0_6, %c0_7, %c0_8], %12 {strides = array<i32>} : memref<1x256x48xbf16, #tpu.memory_space<vmem>>, vector<1x256x48xbf16>,
    return
  }
  func.func @transform_0(%arg0: i32, %arg1: i32) -> (i32, i32, i32) {
    %c0_i32 = arith.constant 0 : i32
    %c0_i32_0 = arith.constant 0 : i32
    return %arg0, %c0_i32, %arg1 : i32, i32, i32
  }
  func.func @transform_1(%arg0: i32, %arg1: i32) -> (i32, i32) {
    %c0_i32 = arith.constant 0 : i32
    %c0_i32_0 = arith.constant 0 : i32
    %c0_i32_1 = arith.constant 0 : i32
    return %c0_i32, %c0_i32_0 : i32, i32
  }
  func.func @transform_2(%arg0: i32, %arg1: i32) -> (i32, i32) {
    %c0_i32 = arith.constant 0 : i32
    %c0_i32_0 = arith.constant 0 : i32
    %c0_i32_1 = arith.constant 0 : i32
    return %c0_i32, %c0_i32_0 : i32, i32
  }
  func.func @transform_3(%arg0: i32, %arg1: i32) -> (i32, i32, i32) {
    %c0_i32 = arith.constant 0 : i32
    %c0_i32_0 = arith.constant 0 : i32
    return %arg0, %arg1, %c0_i32 : i32, i32, i32
  }
}

</mosaic_0001>

<llo_original>
// kernel: tpu_custom_call.1
$region0: #{tpu_custom_call.1}
  #allocation0 [shape = 'u32[]', space=smem, size = 0x4, offset = 0x4, fixed_abs, tag = 'smem constant byte address 0x4 - core index']
  #allocation1 [shape = 'u32[144,128]{1,0:T(1,128)}', space=vmem, size = 0x12000, scoped, tag = 'internal scratch']
  %s0 = inlined_call_operand.hbm [shape: f32[2,32,256], index: 0, kind: input, shape index: {}]
  %s1 = inlined_call_operand.hbm [shape: bf16[32,48], index: 1, kind: input, shape index: {}]
  %s2 = inlined_call_operand.vmem [shape: f32[1,48], index: 2, kind: input, shape index: {}]
  %s3 = inlined_call_operand.vmem [shape: bf16[2,256,48], index: 3, kind: output, shape index: {}]
  %s4 = sld [smem:[#allocation0]]
  $region53: #{tpu_custom_call.1} parent=0
    _
  %s6 = ssub.s32 1, %s4
  %s7 = scalar_select 0, %s6, %s4
  $region1: #{tpu_custom_call.1} parent=0
    #allocation2 [shape = 'u8[65536]{0}', space=vmem, size = 0x10000, scoped, tag = 'input window, operand 0']
    #allocation3 [shape = 's32[2]{0}', space=sflag, size = 0x8, scoped, tag = 'scoped memory for tpu_custom_call.1']
    #allocation4 [shape = 'u8[8192]{0}', space=vmem, size = 0x2000, scoped, tag = 'input window, operand 1, single buffered']
    #allocation5 [shape = 's32[1]{0}', space=sflag, size = 0x4, scoped, tag = 'scoped memory for tpu_custom_call.1']
    %8 = vsyncpa [#allocation3], 0
    %s9 = scalar_lea.sflag [#allocation3], 1
    %10 = vsyncpa %s9, 0
    %11 = vsyncpa [#allocation5], 0
    loop: start=0, step=1, limit=4
    $region2: #{tpu_custom_call.1} parent=1 // loop_pre_header
      _
    $region3: #{tpu_custom_call.1} parent=1 // loop_header
      %s13 = sphi 0, %s17
      %p14 = scmp.ge.s32.totalorder %s13, 4
      %s20 = sphi 0, %s32
      %s21 = sphi 0, %s28
      %s22 = sphi 0, %s20
      %s23 = sphi 0, %s21
      %s24 = sphi 0, %s22
      %s25 = sphi 0, %s23
      %s37 = sphi 0, %s39
      %s40 = sphi 0, %s37
      %s41 = sphi 0, %s40
      %s57 = sphi 0, %s41
      %s61 = sphi 0, %s61
      %s63 = sphi 0, %s61
      %s64 = sphi 0, %s63
      %s78 = sphi 0, %s64
      %s82 = sphi 0, %s82
      %s84 = sphi 0, %s82
      %s85 = sphi 0, %s84
      %s99 = sphi 0, %s85
      %s107 = sphi 0, %s109
      %s110 = sphi 0, %s107
      %s111 = sphi 0, %s110
      %s127 = sphi 0, %s111
    $region4: #{tpu_custom_call.1} parent=1 // loop_header_branch
      %16 = sbr.rel (%p14) target = $region8
    $region5: #{tpu_custom_call.1} parent=1 // loop_body
      %s18 = ssub.s32 %s13, 1
      %s19 = ssub.s32 %s13, 2
      %s26 = sadd.s32 1, %s21
      %p27 = scmp.ge.s32.totalorder %s26, 1
      %s28 = scalar_select %p27, 0, %s26
      %s29 = sadd.s32 1, %s20
      %s30 = scalar_select %p27, %s29, %s20
      %p31 = scmp.ge.s32.totalorder %s30, 2
      %s32 = scalar_select %p31, 0, %s30
      %s33 = ssub.s32 %s20, %s32
      %s34 = ssub.s32 %s21, %s28
      %s35 = sor.u32 %s33, %s34
      %p36 = scmp.eq.s32.totalorder %s35, 0
      %s38 = sadd.s32 %s37, 1
      %s39 = scalar_select %p36, %s37, %s38
      %p42 = pneg %p36
      %p43 = scmp.eq.s32.totalorder %s13, 1
      %p44 = por %p42, %p43
      %p45 = scmp.ne.s32.totalorder %s37, %s40
      %p46 = scmp.eq.s32.totalorder %s13, 0
      %p47 = por %p45, %p46
      %p48 = scmp.ne.s32.totalorder %s37, %s40
      %p49 = scmp.eq.s32.totalorder %s18, 1
      %p50 = por %p48, %p49
      %p51 = scmp.ne.s32.totalorder %s40, %s41
      %p52 = scmp.eq.s32.totalorder %s18, 0
      %p53 = por %p51, %p52
      %p54 = scmp.ne.s32.totalorder %s40, %s41
      %p55 = scmp.eq.s32.totalorder %s19, 1
      %p56 = por %p54, %p55
      %p58 = scmp.ne.s32.totalorder %s41, %s57
      %p59 = scmp.eq.s32.totalorder %s19, 0
      %p60 = por %p58, %p59
      %s62 = sadd.s32 %s61, 1
      %p65 = scmp.eq.s32.totalorder %s13, 1
      %p66 = scmp.ne.s32.totalorder %s61, %s63
      %p67 = scmp.eq.s32.totalorder %s13, 0
      %p68 = por %p66, %p67
      %p69 = scmp.ne.s32.totalorder %s61, %s63
      %p70 = scmp.eq.s32.totalorder %s18, 1
      %p71 = por %p69, %p70
      %p72 = scmp.ne.s32.totalorder %s63, %s64
      %p73 = scmp.eq.s32.totalorder %s18, 0
      %p74 = por %p72, %p73
      %p75 = scmp.ne.s32.totalorder %s63, %s64
      %p76 = scmp.eq.s32.totalorder %s19, 1
      %p77 = por %p75, %p76
      %p79 = scmp.ne.s32.totalorder %s64, %s78
      %p80 = scmp.eq.s32.totalorder %s19, 0
      %p81 = por %p79, %p80
      %s83 = sadd.s32 %s82, 1
      %p86 = scmp.eq.s32.totalorder %s13, 1
      %p87 = scmp.ne.s32.totalorder %s82, %s84
      %p88 = scmp.eq.s32.totalorder %s13, 0
      %p89 = por %p87, %p88
      %p90 = scmp.ne.s32.totalorder %s82, %s84
      %p91 = scmp.eq.s32.totalorder %s18, 1
      %p92 = por %p90, %p91
      %p93 = scmp.ne.s32.totalorder %s84, %s85
      %p94 = scmp.eq.s32.totalorder %s18, 0
      %p95 = por %p93, %p94
      %p96 = scmp.ne.s32.totalorder %s84, %s85
      %p97 = scmp.eq.s32.totalorder %s19, 1
      %p98 = por %p96, %p97
      %p100 = scmp.ne.s32.totalorder %s85, %s99
      %p101 = scmp.eq.s32.totalorder %s19, 0
      %p102 = por %p100, %p101
      %s103 = ssub.s32 %s20, %s32
      %s104 = ssub.s32 %s21, %s28
      %s105 = sor.u32 %s103, %s104
      %p106 = scmp.eq.s32.totalorder %s105, 0
      %s108 = sadd.s32 %s107, 1
      %s109 = scalar_select %p106, %s107, %s108
      %p112 = pneg %p106
      %p113 = scmp.eq.s32.totalorder %s13, 1
      %p114 = por %p112, %p113
      %p115 = scmp.ne.s32.totalorder %s107, %s110
      %p116 = scmp.eq.s32.totalorder %s13, 0
      %p117 = por %p115, %p116
      %p118 = scmp.ne.s32.totalorder %s107, %s110
      %p119 = scmp.eq.s32.totalorder %s18, 1
      %p120 = por %p118, %p119
      %p121 = scmp.ne.s32.totalorder %s110, %s111
      %p122 = scmp.eq.s32.totalorder %s18, 0
      %p123 = por %p121, %p122
      %p124 = scmp.ne.s32.totalorder %s110, %s111
      %p125 = scmp.eq.s32.totalorder %s19, 1
      %p126 = por %p124, %p125
      %p128 = scmp.ne.s32.totalorder %s111, %s127
      %p129 = scmp.eq.s32.totalorder %s19, 0
      %p130 = por %p128, %p129
      %p131 = scmp.le.s32.totalorder 1, %s13
      %p132 = scmp.lt.s32.totalorder %s13, 3
      %p133 = pnand %p131, %p132
      %p134 = pneg %p133
      // Predicated region
      $region9: #{tpu_custom_call.1} parent=5 // pred_check
        _
      $region10: #{tpu_custom_call.1} parent=5 // pred_check_branch
        %136 = sbr.rel (%p133) target = $region12
      $region11: #{tpu_custom_call.1} parent=5 // pred_region
        %s137 = ssub.s32 %s13, 1
        // Predicated region
        $region13: #{tpu_custom_call.1} parent=11 // pred_check
          %p138 = pneg %p74
        $region14: #{tpu_custom_call.1} parent=11 // pred_check_branch
          %140 = sbr.rel (%p138) target = $region16
        $region15: #{tpu_custom_call.1} parent=11 // pred_region
          %s142 = ssub.s32 256, 256
          %143 = vsyncadd [#allocation5], %s142
          %s144 = sshll.u32 [#allocation4], 4
          %s145 = int_to_ptr.vmem [resolvable:$true] %s144
          %150 = dma.hbm_to_vmem [thread:$0]  %s1, 256, %s145, [#allocation5], 64, 64, 4
        $region16: #{tpu_custom_call.1} parent=11 // pred_fallthru
          _
        // Predicated region
        $region17: #{tpu_custom_call.1} parent=11 // pred_check
          %p151 = pneg %p95
        $region18: #{tpu_custom_call.1} parent=11 // pred_check_branch
          %153 = sbr.rel (%p151) target = $region20
        $region19: #{tpu_custom_call.1} parent=11 // pred_region
          _
        $region20: #{tpu_custom_call.1} parent=11 // pred_fallthru
          _
      $region12: #{tpu_custom_call.1} parent=5 // pred_fallthru
        _
      %p154 = scmp.lt.s32.totalorder %s13, 2
      // Predicated region
      $region21: #{tpu_custom_call.1} parent=5 // pred_check
        %p155 = pneg %p154
      $region22: #{tpu_custom_call.1} parent=5 // pred_check_branch
        %157 = sbr.rel (%p155) target = $region24
      $region23: #{tpu_custom_call.1} parent=5 // pred_region
        // Predicated region
        $region25: #{tpu_custom_call.1} parent=23 // pred_check
          %p158 = pneg %p47
        $region26: #{tpu_custom_call.1} parent=23 // pred_check_branch
          %160 = sbr.rel (%p158) target = $region28
        $region27: #{tpu_custom_call.1} parent=23 // pred_region
          %s161 = sand.u32 %s37, 1
          %s162 = scalar_lea.sflag [#allocation3], %s161
          %s163 = sand.u32 %s37, 1
          %s164 = smul.addr %s163, 64
          %s165 = scalar_lea.vmem [#allocation2], %s164
          %s166 = smul.u32 2, %s21
          %s168 = ssub.s32 1024, 1024
          %169 = vsyncadd %s162, %s168
          %s170 = smul.addr %s20, 8
          %s171 = sadd.s32 %s166, %s170
          %s172 = smul.addr %s171, 128
          %s173 = scalar_lea.hbm %s0, %s172
          %s174 = sshll.u32 %s165, 4
          %s175 = int_to_ptr.vmem [resolvable:$true] %s174
          %180 = dma.hbm_to_vmem [thread:$0]  %s173, 1024, %s175, %s162, 256, 256, 16
        $region28: #{tpu_custom_call.1} parent=23 // pred_fallthru
          _
      $region24: #{tpu_custom_call.1} parent=5 // pred_fallthru
        _
      %p181 = scmp.le.s32.totalorder 1, %s13
      %p182 = scmp.lt.s32.totalorder %s13, 3
      %p183 = pnand %p181, %p182
      %p184 = pneg %p183
      // Predicated region
      $region29: #{tpu_custom_call.1} parent=5 // pred_check
        _
      $region30: #{tpu_custom_call.1} parent=5 // pred_check_branch
        %186 = sbr.rel (%p183) target = $region32
      $region31: #{tpu_custom_call.1} parent=5 // pred_region
        %s187 = ssub.s32 %s13, 1
        %s188 = sand.u32 %s40, 1
        %s189 = scalar_lea.sflag [#allocation3], %s188
        %s190 = sand.u32 %s40, 1
        %s191 = smul.addr %s190, 64
        %s192 = scalar_lea.vmem [#allocation2], %s191
        // Predicated region
        $region33: #{tpu_custom_call.1} parent=31 // pred_check
          %p193 = pneg %p53
        $region34: #{tpu_custom_call.1} parent=31 // pred_check_branch
          %195 = sbr.rel (%p193) target = $region36
        $region35: #{tpu_custom_call.1} parent=31 // pred_region
          %196 = dma.done %s189, 1024
        $region36: #{tpu_custom_call.1} parent=31 // pred_fallthru
          _
        // Predicated region
        $region37: #{tpu_custom_call.1} parent=31 // pred_check
          %p197 = pneg %p74
        $region38: #{tpu_custom_call.1} parent=31 // pred_check_branch
          %199 = sbr.rel (%p197) target = $region40
        $region39: #{tpu_custom_call.1} parent=31 // pred_region
          %200 = dma.done [#allocation5], 256
        $region40: #{tpu_custom_call.1} parent=31 // pred_fallthru
          _
        %s201 = sand.u32 %s40, 1
        %s202 = scalar_lea.sflag [#allocation3], %s201
        %s203 = sand.u32 %s40, 1
        %s204 = smul.addr %s203, 64
        %s205 = scalar_lea.vmem [#allocation2], %s204
        %p206 = pneg %p53
        %p207 = pneg %p50
        %p208 = pneg %p74
        %p209 = pneg %p71
        %p210 = pneg %p95
        %p211 = pneg %p92
        %p212 = pneg %p123
        %p213 = pneg %p120
        %s214 = smul.u32 32, %s23
        %p215 = scmp.lt.s32.totalorder %s22, 1
        %s216 = scalar_select %p215, %s22, 1
        %p217 = scmp.lt.s32.totalorder %s214, 31
        %s218 = scalar_select %p217, %s214, 31
        %s219 = smul.addr %s216, 32
        %s220 = sadd.s32 %s218, %s219
        %s221 = smul.addr %s220, 4
        %s222 = scalar_lea.vmem %s3, %s221
        %s223 = smul.u32 2, %s23
        %s224 = smul.u32 32, %s23
        %p225 = scmp.lt.s32.totalorder %s22, 1
        %s226 = scalar_select %p225, %s22, 1
        %p227 = scmp.lt.s32.totalorder %s224, 31
        %s228 = scalar_select %p227, %s224, 31
        %s229 = smul.addr %s226, 32
        %s230 = sadd.s32 %s228, %s229
        %s231 = smul.addr %s230, 4
        %s232 = scalar_lea.vmem %s3, %s231
        %s233 = smul.u32 32, %s23
        %v235 = vld [vmem:[%s192] sm:$0xff]
        %v236 = vld [vmem:[%s192 + $0x8] sm:$0xff]
        %v237 = vld [vmem:[%s192 + $0x10] sm:$0xff]
        %v238 = vld [vmem:[%s192 + $0x18] sm:$0xff]
        %v239 = vld [vmem:[%s192 + $0x20] sm:$0xff]
        %v240 = vld [vmem:[%s192 + $0x28] sm:$0xff]
        %v241 = vld [vmem:[%s192 + $0x30] sm:$0xff]
        %v242 = vld [vmem:[%s192 + $0x38] sm:$0xff]
        %243 = vxpose.xlu0.b32.start [1/16] %v235, 128
        %244 = vxpose.xlu0.b32.cont [2/16] %v237, 128
        %245 = vxpose.xlu0.b32.cont [3/16] %v239, 128
        %246 = vxpose.xlu0.b32.cont [4/16] %v241, 128
        %247 = vxpose.xlu0.b32.cont [5/16] 0.0, 128
        %248 = vxpose.xlu0.b32.cont [6/16] 0.0, 128
        %249 = vxpose.xlu0.b32.cont [7/16] 0.0, 128
        %250 = vxpose.xlu0.b32.cont [8/16] 0.0, 128
        %251 = vxpose.xlu0.b32.cont [9/16] 0.0, 128
        %252 = vxpose.xlu0.b32.cont [10/16] 0.0, 128
        %253 = vxpose.xlu0.b32.cont [11/16] 0.0, 128
        %254 = vxpose.xlu0.b32.cont [12/16] 0.0, 128
        %255 = vxpose.xlu0.b32.cont [13/16] 0.0, 128
        %256 = vxpose.xlu0.b32.cont [14/16] 0.0, 128
        %257 = vxpose.xlu0.b32.cont [15/16] 0.0, 128
        %258 = vxpose.xlu0.b32.end [16/16] 0.0, 128
        %v259 = vpop.trf.xlu0
        %v260 = vpop.trf.xlu0
        %v261 = vpop.trf.xlu0
        %v262 = vpop.trf.xlu0
        %v263 = vpop.trf.xlu0
        %v264 = vpop.trf.xlu0
        %v265 = vpop.trf.xlu0
        %v266 = vpop.trf.xlu0
        %v267 = vpop.trf.xlu0
        %v268 = vpop.trf.xlu0
        %v269 = vpop.trf.xlu0
        %v270 = vpop.trf.xlu0
        %v271 = vpop.trf.xlu0
        %v272 = vpop.trf.xlu0
        %v273 = vpop.trf.xlu0
        %v274 = vpop.trf.xlu0
        %275 = vxpose.xlu0.b32.start [1/16] %v236, 128
        %276 = vxpose.xlu0.b32.cont [2/16] %v238, 128
        %277 = vxpose.xlu0.b32.cont [3/16] %v240, 128
        %278 = vxpose.xlu0.b32.cont [4/16] %v242, 128
        %279 = vxpose.xlu0.b32.cont [5/16] 0.0, 128
        %280 = vxpose.xlu0.b32.cont [6/16] 0.0, 128
        %281 = vxpose.xlu0.b32.cont [7/16] 0.0, 128
        %282 = vxpose.xlu0.b32.cont [8/16] 0.0, 128
        %283 = vxpose.xlu0.b32.cont [9/16] 0.0, 128
        %284 = vxpose.xlu0.b32.cont [10/16] 0.0, 128
        %285 = vxpose.xlu0.b32.cont [11/16] 0.0, 128
        %286 = vxpose.xlu0.b32.cont [12/16] 0.0, 128
        %287 = vxpose.xlu0.b32.cont [13/16] 0.0, 128
        %288 = vxpose.xlu0.b32.cont [14/16] 0.0, 128
        %289 = vxpose.xlu0.b32.cont [15/16] 0.0, 128
        %290 = vxpose.xlu0.b32.end [16/16] 0.0, 128
        %v291 = vpop.trf.xlu0
        %v292 = vpop.trf.xlu0
        %v293 = vpop.trf.xlu0
        %v294 = vpop.trf.xlu0
        %v295 = vpop.trf.xlu0
        %v296 = vpop.trf.xlu0
        %v297 = vpop.trf.xlu0
        %v298 = vpop.trf.xlu0
        %v299 = vpop.trf.xlu0
        %v300 = vpop.trf.xlu0
        %v301 = vpop.trf.xlu0
        %v302 = vpop.trf.xlu0
        %v303 = vpop.trf.xlu0
        %v304 = vpop.trf.xlu0
        %v305 = vpop.trf.xlu0
        %v306 = vpop.trf.xlu0
        %v307 = vpack.c.bf16 %v260, %v259
        %v308 = vpack.c.bf16 %v262, %v261
        %v309 = vpack.c.bf16 %v264, %v263
        %v310 = vpack.c.bf16 %v266, %v265
        %v311 = vpack.c.bf16 %v268, %v267
        %v312 = vpack.c.bf16 %v270, %v269
        %v313 = vpack.c.bf16 %v272, %v271
        %v314 = vpack.c.bf16 %v274, %v273
        %v315 = vpack.c.bf16 %v292, %v291
        %v316 = vpack.c.bf16 %v294, %v293
        %v317 = vpack.c.bf16 %v296, %v295
        %v318 = vpack.c.bf16 %v298, %v297
        %v319 = vpack.c.bf16 %v300, %v299
        %v320 = vpack.c.bf16 %v302, %v301
        %v321 = vpack.c.bf16 %v304, %v303
        %v322 = vpack.c.bf16 %v306, %v305
        %v323 = vld [vmem:[#allocation4] sm:$0xf]
        %v324 = vld [vmem:[#allocation4 + $0x4] sm:$0xf]
        %v325 = vld [vmem:[#allocation4 + $0x8] sm:$0xf]
        %v326 = vld [vmem:[#allocation4 + $0xc] sm:$0xf]
        %v327 = vld [vmem:[%s2] sm:$0x1]
        %v329 = vlaneseq
        %v330 = vshrl.u32 %v329, 7
        %v331 = vsub.s32 0, %v330
        %v332 = vrot.slane %v327, %v331
        %v338 = vunpack.c.l.b16 %v323
        %v339 = vunpack.c.l.b16 %v324
        %v340 = vunpack.c.l.b16 %v325
        %v341 = vunpack.c.l.b16 %v326
        %v342 = vpack.c.b16 %v339, %v338
        %v343 = vpack.c.b16 %v341, %v340
        %vm346 = vcmask 261120
        %v348 = vsel %vm346, %v307, 0
        %v351 = vsel %vm346, %v308, 0
        %v354 = vsel %vm346, %v309, 0
        %v357 = vsel %vm346, %v310, 0
        %v360 = vsel %vm346, %v311, 0
        %v363 = vsel %vm346, %v312, 0
        %v366 = vsel %vm346, %v313, 0
        %v369 = vsel %vm346, %v314, 0
        %v372 = vsel %vm346, %v315, 0
        %v375 = vsel %vm346, %v316, 0
        %v378 = vsel %vm346, %v317, 0
        %v381 = vsel %vm346, %v318, 0
        %v384 = vsel %vm346, %v319, 0
        %v387 = vsel %vm346, %v320, 0
        %v390 = vsel %vm346, %v321, 0
        %v393 = vsel %vm346, %v322, 0
        %395 = vmatprep.subr.bf16.mxu0 0
        %396 = vmatpush1.bf16.msra.mxu0 %v342
        %397 = vmatprep.subr.bf16.mxu0 0
        %398 = vmatpush1.bf16.msra.mxu0 %v343
        %399 = vmatprep.subr.bf16.mxu0 0
        %400 = vmatpush1.bf16.msra.mxu0 0
        %401 = vmatprep.subr.bf16.mxu0 0
        %402 = vmatpush1.bf16.msra.mxu0 0
        %403 = vmatprep.subr.bf16.mxu0 0
        %404 = vmatpush1.bf16.msra.mxu0 0
        %405 = vmatprep.subr.bf16.mxu0 0
        %406 = vmatpush1.bf16.msra.mxu0 0
        %407 = vmatprep.subr.bf16.mxu0 0
        %408 = vmatpush1.bf16.msra.mxu0 0
        %409 = vmatprep.subr.bf16.mxu0 0
        %410 = vmatpush1.bf16.msra.mxu0 0
        %411 = vmatprep.subr.bf16.mxu0 0
        %412 = vmatpush1.bf16.msra.mxu0 0
        %413 = vmatprep.subr.bf16.mxu0 0
        %414 = vmatpush1.bf16.msra.mxu0 0
        %415 = vmatprep.subr.bf16.mxu0 0
        %416 = vmatpush1.bf16.msra.mxu0 0
        %417 = vmatprep.subr.bf16.mxu0 0
        %418 = vmatpush1.bf16.msra.mxu0 0
        %419 = vmatprep.subr.bf16.mxu0 0
        %420 = vmatpush1.bf16.msra.mxu0 0
        %421 = vmatprep.subr.bf16.mxu0 0
        %422 = vmatpush1.bf16.msra.mxu0 0
        %423 = vmatprep.subr.bf16.mxu0 0
        %424 = vmatpush1.bf16.msra.mxu0 0
        %425 = vmatprep.subr.bf16.mxu0 0
        %426 = vmatpush1.bf16.msra.mxu0 0
        %427 = vmatprep.mubr.bf16.mxu0 0
        %428 = vmatmul.mubr.bf16.gmra.mrb[0].mxu0 %v348
        %v429 = vpop.f32.mrb[0].mxu0
        %v430 = vadd.f32 %v332, %v429
        %v431 = vpop.f32.mrb[0].mxu0
        %v432 = vpop.f32.mrb[0].mxu0
        %v433 = vadd.f32 %v332, %v432
        %v434 = vpop.f32.mrb[0].mxu0
        %435 = vmatprep.mubr.bf16.mxu0 0
        %436 = vmatmul.mubr.bf16.gmra.mrb[0].mxu0 %v351
        %v437 = vpop.f32.mrb[0].mxu0
        %v438 = vadd.f32 %v332, %v437
        %v439 = vpop.f32.mrb[0].mxu0
        %v440 = vpop.f32.mrb[0].mxu0
        %v441 = vadd.f32 %v332, %v440
        %v442 = vpop.f32.mrb[0].mxu0
        %443 = vmatprep.mubr.bf16.mxu0 0
        %444 = vmatmul.mubr.bf16.gmra.mrb[0].mxu0 %v354
        %v445 = vpop.f32.mrb[0].mxu0
        %v446 = vadd.f32 %v332, %v445
        %v447 = vpop.f32.mrb[0].mxu0
        %v448 = vpop.f32.mrb[0].mxu0
        %v449 = vadd.f32 %v332, %v448
        %v450 = vpop.f32.mrb[0].mxu0
        %451 = vmatprep.mubr.bf16.mxu0 0
        %452 = vmatmul.mubr.bf16.gmra.mrb[0].mxu0 %v357
        %v453 = vpop.f32.mrb[0].mxu0
        %v454 = vadd.f32 %v332, %v453
        %v455 = vpop.f32.mrb[0].mxu0
        %v456 = vpop.f32.mrb[0].mxu0
        %v457 = vadd.f32 %v332, %v456
        %v458 = vpop.f32.mrb[0].mxu0
        %459 = vmatprep.mubr.bf16.mxu0 0
        %460 = vmatmul.mubr.bf16.gmra.mrb[0].mxu0 %v360
        %v461 = vpop.f32.mrb[0].mxu0
        %v462 = vadd.f32 %v332, %v461
        %v463 = vpop.f32.mrb[0].mxu0
        %v464 = vpop.f32.mrb[0].mxu0
        %v465 = vadd.f32 %v332, %v464
        %v466 = vpop.f32.mrb[0].mxu0
        %467 = vmatprep.mubr.bf16.mxu0 0
        %468 = vmatmul.mubr.bf16.gmra.mrb[0].mxu0 %v363
        %v469 = vpop.f32.mrb[0].mxu0
        %v470 = vadd.f32 %v332, %v469
        %v471 = vpop.f32.mrb[0].mxu0
        %v472 = vpop.f32.mrb[0].mxu0
        %v473 = vadd.f32 %v332, %v472
        %v474 = vpop.f32.mrb[0].mxu0
        %475 = vmatprep.mubr.bf16.mxu0 0
        %476 = vmatmul.mubr.bf16.gmra.mrb[0].mxu0 %v366
        %v477 = vpop.f32.mrb[0].mxu0
        %v478 = vadd.f32 %v332, %v477
        %v479 = vpop.f32.mrb[0].mxu0
        %v480 = vpop.f32.mrb[0].mxu0
        %v481 = vadd.f32 %v332, %v480
        %v482 = vpop.f32.mrb[0].mxu0
        %483 = vmatprep.mubr.bf16.mxu0 0
        %484 = vmatmul.mubr.bf16.gmra.mrb[0].mxu0 %v369
        %v485 = vpop.f32.mrb[0].mxu0
        %v486 = vadd.f32 %v332, %v485
        %v487 = vpop.f32.mrb[0].mxu0
        %v488 = vpop.f32.mrb[0].mxu0
        %v489 = vadd.f32 %v332, %v488
        %v490 = vpop.f32.mrb[0].mxu0
        %491 = vmatprep.mubr.bf16.mxu0 0
        %492 = vmatmul.mubr.bf16.gmra.mrb[0].mxu0 %v372
        %v493 = vpop.f32.mrb[0].mxu0
        %v494 = vadd.f32 %v332, %v493
        %v495 = vpop.f32.mrb[0].mxu0
        %v496 = vpop.f32.mrb[0].mxu0
        %v497 = vadd.f32 %v332, %v496
        %v498 = vpop.f32.mrb[0].mxu0
        %499 = vmatprep.mubr.bf16.mxu0 0
        %500 = vmatmul.mubr.bf16.gmra.mrb[0].mxu0 %v375
        %v501 = vpop.f32.mrb[0].mxu0
        %v502 = vadd.f32 %v332, %v501
        %v503 = vpop.f32.mrb[0].mxu0
        %v504 = vpop.f32.mrb[0].mxu0
        %v505 = vadd.f32 %v332, %v504
        %v506 = vpop.f32.mrb[0].mxu0
        %507 = vmatprep.mubr.bf16.mxu0 0
        %508 = vmatmul.mubr.bf16.gmra.mrb[0].mxu0 %v378
        %v509 = vpop.f32.mrb[0].mxu0
        %v510 = vadd.f32 %v332, %v509
        %v511 = vpop.f32.mrb[0].mxu0
        %v512 = vpop.f32.mrb[0].mxu0
        %v513 = vadd.f32 %v332, %v512
        %v514 = vpop.f32.mrb[0].mxu0
        %515 = vmatprep.mubr.bf16.mxu0 0
        %516 = vmatmul.mubr.bf16.gmra.mrb[0].mxu0 %v381
        %v517 = vpop.f32.mrb[0].mxu0
        %v518 = vadd.f32 %v332, %v517
        %v519 = vpop.f32.mrb[0].mxu0
        %v520 = vpop.f32.mrb[0].mxu0
        %v521 = vadd.f32 %v332, %v520
        %v522 = vpop.f32.mrb[0].mxu0
        %523 = vmatprep.mubr.bf16.mxu0 0
        %524 = vmatmul.mubr.bf16.gmra.mrb[0].mxu0 %v384
        %v525 = vpop.f32.mrb[0].mxu0
        %v526 = vadd.f32 %v332, %v525
        %v527 = vpop.f32.mrb[0].mxu0
        %v528 = vpop.f32.mrb[0].mxu0
        %v529 = vadd.f32 %v332, %v528
        %v530 = vpop.f32.mrb[0].mxu0
        %531 = vmatprep.mubr.bf16.mxu0 0
        %532 = vmatmul.mubr.bf16.gmra.mrb[0].mxu0 %v387
        %v533 = vpop.f32.mrb[0].mxu0
        %v534 = vadd.f32 %v332, %v533
        %v535 = vpop.f32.mrb[0].mxu0
        %v536 = vpop.f32.mrb[0].mxu0
        %v537 = vadd.f32 %v332, %v536
        %v538 = vpop.f32.mrb[0].mxu0
        %539 = vmatprep.mubr.bf16.mxu0 0
        %540 = vmatmul.mubr.bf16.gmra.mrb[0].mxu0 %v390
        %v541 = vpop.f32.mrb[0].mxu0
        %v542 = vadd.f32 %v332, %v541
        %v543 = vpop.f32.mrb[0].mxu0
        %v544 = vpop.f32.mrb[0].mxu0
        %v545 = vadd.f32 %v332, %v544
        %v546 = vpop.f32.mrb[0].mxu0
        %547 = vmatprep.mubr.bf16.mxu0 0
        %548 = vmatmul.mubr.bf16.gmra.mrb[0].mxu0 %v393
        %v549 = vpop.f32.mrb[0].mxu0
        %v550 = vadd.f32 %v332, %v549
        %v551 = vpop.f32.mrb[0].mxu0
        %v552 = vpop.f32.mrb[0].mxu0
        %v553 = vadd.f32 %v332, %v552
        %v554 = vpop.f32.mrb[0].mxu0
        %555 = vdwg.mxu0
        %v556 = vpack.c.bf16 %v433, %v430
        %v557 = vpack.c.bf16 %v441, %v438
        %v558 = vpack.c.bf16 %v449, %v446
        %v559 = vpack.c.bf16 %v457, %v454
        %v560 = vpack.c.bf16 %v465, %v462
        %v561 = vpack.c.bf16 %v473, %v470
        %v562 = vpack.c.bf16 %v481, %v478
        %v563 = vpack.c.bf16 %v489, %v486
        %v564 = vpack.c.bf16 %v497, %v494
        %v565 = vpack.c.bf16 %v505, %v502
        %v566 = vpack.c.bf16 %v513, %v510
        %v567 = vpack.c.bf16 %v521, %v518
        %v568 = vpack.c.bf16 %v529, %v526
        %v569 = vpack.c.bf16 %v537, %v534
        %v570 = vpack.c.bf16 %v545, %v542
        %v571 = vpack.c.bf16 %v553, %v550
        %v588 = vunpack.c.l.b16 %v556
        %v589 = vunpack.c.h.b16 %v556
        %v590 = vunpack.c.l.b16 %v557
        %v591 = vunpack.c.h.b16 %v557
        %v592 = vunpack.c.l.b16 %v558
        %v593 = vunpack.c.h.b16 %v558
        %v594 = vunpack.c.l.b16 %v559
        %v595 = vunpack.c.h.b16 %v559
        %v596 = vunpack.c.l.b16 %v560
        %v597 = vunpack.c.h.b16 %v560
        %v598 = vunpack.c.l.b16 %v561
        %v599 = vunpack.c.h.b16 %v561
        %v600 = vunpack.c.l.b16 %v562
        %v601 = vunpack.c.h.b16 %v562
        %v602 = vunpack.c.l.b16 %v563
        %v603 = vunpack.c.h.b16 %v563
        %v604 = vunpack.c.l.b16 %v564
        %v605 = vunpack.c.h.b16 %v564
        %v606 = vunpack.c.l.b16 %v565
        %v607 = vunpack.c.h.b16 %v565
        %v608 = vunpack.c.l.b16 %v566
        %v609 = vunpack.c.h.b16 %v566
        %v610 = vunpack.c.l.b16 %v567
        %v611 = vunpack.c.h.b16 %v567
        %v612 = vunpack.c.l.b16 %v568
        %v613 = vunpack.c.h.b16 %v568
        %v614 = vunpack.c.l.b16 %v569
        %v615 = vunpack.c.h.b16 %v569
        %v616 = vunpack.c.l.b16 %v570
        %v617 = vunpack.c.h.b16 %v570
        %v618 = vunpack.c.l.b16 %v571
        %v619 = vunpack.c.h.b16 %v571
        %v620 = vpack.c.b16 %v588, %v588
        %v621 = vpack.c.b16 %v589, %v589
        %v622 = vpack.c.b16 %v590, %v590
        %v623 = vpack.c.b16 %v591, %v591
        %v624 = vpack.c.b16 %v592, %v592
        %v625 = vpack.c.b16 %v593, %v593
        %v626 = vpack.c.b16 %v594, %v594
        %v627 = vpack.c.b16 %v595, %v595
        %v628 = vpack.c.b16 %v596, %v596
        %v629 = vpack.c.b16 %v597, %v597
        %v630 = vpack.c.b16 %v598, %v598
        %v631 = vpack.c.b16 %v599, %v599
        %v632 = vpack.c.b16 %v600, %v600
        %v633 = vpack.c.b16 %v601, %v601
        %v634 = vpack.c.b16 %v602, %v602
        %v635 = vpack.c.b16 %v603, %v603
        %v636 = vpack.c.b16 %v604, %v604
        %v637 = vpack.c.b16 %v605, %v605
        %v638 = vpack.c.b16 %v606, %v606
        %v639 = vpack.c.b16 %v607, %v607
        %v640 = vpack.c.b16 %v608, %v608
        %v641 = vpack.c.b16 %v609, %v609
        %v642 = vpack.c.b16 %v610, %v610
        %v643 = vpack.c.b16 %v611, %v611
        %v644 = vpack.c.b16 %v612, %v612
        %v645 = vpack.c.b16 %v613, %v613
        %v646 = vpack.c.b16 %v614, %v614
        %v647 = vpack.c.b16 %v615, %v615
        %v648 = vpack.c.b16 %v616, %v616
        %v649 = vpack.c.b16 %v617, %v617
        %v650 = vpack.c.b16 %v618, %v618
        %v651 = vpack.c.b16 %v619, %v619
        %vm684 = vcmask 388096
        %685 = vst.msk [vmem:[%s232] sm:$0xf] %vm684, %v620
        %686 = vst.msk [vmem:[%s232 + $0x4] sm:$0xf] %vm684, %v621
        %687 = vst.msk [vmem:[%s232 + $0x8] sm:$0xf] %vm684, %v622
        %688 = vst.msk [vmem:[%s232 + $0xc] sm:$0xf] %vm684, %v623
        %689 = vst.msk [vmem:[%s232 + $0x10] sm:$0xf] %vm684, %v624
        %690 = vst.msk [vmem:[%s232 + $0x14] sm:$0xf] %vm684, %v625
        %691 = vst.msk [vmem:[%s232 + $0x18] sm:$0xf] %vm684, %v626
        %692 = vst.msk [vmem:[%s232 + $0x1c] sm:$0xf] %vm684, %v627
        %693 = vst.msk [vmem:[%s232 + $0x20] sm:$0xf] %vm684, %v628
        %694 = vst.msk [vmem:[%s232 + $0x24] sm:$0xf] %vm684, %v629
        %695 = vst.msk [vmem:[%s232 + $0x28] sm:$0xf] %vm684, %v630
        %696 = vst.msk [vmem:[%s232 + $0x2c] sm:$0xf] %vm684, %v631
        %697 = vst.msk [vmem:[%s232 + $0x30] sm:$0xf] %vm684, %v632
        %698 = vst.msk [vmem:[%s232 + $0x34] sm:$0xf] %vm684, %v633
        %699 = vst.msk [vmem:[%s232 + $0x38] sm:$0xf] %vm684, %v634
        %700 = vst.msk [vmem:[%s232 + $0x3c] sm:$0xf] %vm684, %v635
        %701 = vst.msk [vmem:[%s232 + $0x40] sm:$0xf] %vm684, %v636
        %702 = vst.msk [vmem:[%s232 + $0x44] sm:$0xf] %vm684, %v637
        %703 = vst.msk [vmem:[%s232 + $0x48] sm:$0xf] %vm684, %v638
        %704 = vst.msk [vmem:[%s232 + $0x4c] sm:$0xf] %vm684, %v639
        %705 = vst.msk [vmem:[%s232 + $0x50] sm:$0xf] %vm684, %v640
        %706 = vst.msk [vmem:[%s232 + $0x54] sm:$0xf] %vm684, %v641
        %707 = vst.msk [vmem:[%s232 + $0x58] sm:$0xf] %vm684, %v642
        %708 = vst.msk [vmem:[%s232 + $0x5c] sm:$0xf] %vm684, %v643
        %709 = vst.msk [vmem:[%s232 + $0x60] sm:$0xf] %vm684, %v644
        %710 = vst.msk [vmem:[%s232 + $0x64] sm:$0xf] %vm684, %v645
        %711 = vst.msk [vmem:[%s232 + $0x68] sm:$0xf] %vm684, %v646
        %712 = vst.msk [vmem:[%s232 + $0x6c] sm:$0xf] %vm684, %v647
        %713 = vst.msk [vmem:[%s232 + $0x70] sm:$0xf] %vm684, %v648
        %714 = vst.msk [vmem:[%s232 + $0x74] sm:$0xf] %vm684, %v649
        %715 = vst.msk [vmem:[%s232 + $0x78] sm:$0xf] %vm684, %v650
        %716 = vst.msk [vmem:[%s232 + $0x7c] sm:$0xf] %vm684, %v651
        %s717 = smul.u32 32, %s23
        %p718 = scmp.lt.s32.totalorder %s22, 1
        %s719 = scalar_select %p718, %s22, 1
        %p720 = scmp.lt.s32.totalorder %s717, 31
        %s721 = scalar_select %p720, %s717, 31
        %s722 = smul.addr %s719, 32
        %s723 = sadd.s32 %s721, %s722
        %s724 = smul.addr %s723, 4
        %s725 = scalar_lea.vmem %s3, %s724
        // Predicated region
        $region41: #{tpu_custom_call.1} parent=31 // pred_check
          %p726 = pneg %p120
        $region42: #{tpu_custom_call.1} parent=31 // pred_check_branch
          %728 = sbr.rel (%p726) target = $region44
        $region43: #{tpu_custom_call.1} parent=31 // pred_region
          %s729 = smul.u32 32, %s23
        $region44: #{tpu_custom_call.1} parent=31 // pred_fallthru
          _
      $region32: #{tpu_custom_call.1} parent=5 // pred_fallthru
        _
      %p730 = scmp.le.s32.totalorder 2, %s13
      // Predicated region
      $region45: #{tpu_custom_call.1} parent=5 // pred_check
        %p731 = pneg %p730
      $region46: #{tpu_custom_call.1} parent=5 // pred_check_branch
        %733 = sbr.rel (%p731) target = $region48
      $region47: #{tpu_custom_call.1} parent=5 // pred_region
        %s734 = ssub.s32 %s13, 2
        // Predicated region
        $region49: #{tpu_custom_call.1} parent=47 // pred_check
          %p735 = pneg %p126
        $region50: #{tpu_custom_call.1} parent=47 // pred_check_branch
          %737 = sbr.rel (%p735) target = $region52
        $region51: #{tpu_custom_call.1} parent=47 // pred_region
          %s738 = smul.u32 32, %s25
          %p739 = scmp.lt.s32.totalorder %s24, 1
          %s740 = scalar_select %p739, %s24, 1
          %p741 = scmp.lt.s32.totalorder %s738, 31
          %s742 = scalar_select %p741, %s738, 31
          %s743 = smul.addr %s740, 32
          %s744 = sadd.s32 %s742, %s743
          %s745 = smul.addr %s744, 4
          %s746 = scalar_lea.vmem %s3, %s745
        $region52: #{tpu_custom_call.1} parent=47 // pred_fallthru
          _
      $region48: #{tpu_custom_call.1} parent=5 // pred_fallthru
        _
    $region6: #{tpu_custom_call.1} parent=1 // loop_footer
      %s17 = sadd.s32 1, %s13
    $region7: #{tpu_custom_call.1} parent=1 // loop_footer_branch
      %12 = sbr.rel target = $region3
    $region8: #{tpu_custom_call.1} parent=1 // loop_exit
      _
    %747 = vsyncpa [#allocation3], 1
    %s748 = scalar_lea.sflag [#allocation3], 1
    %749 = vsyncpa %s748, 1
    %750 = vsyncpa [#allocation5], 1

</llo_original>
